<compile_context>
chip_gen: v5e
topology: v5e:2x2
jax: 0.10.0
libtpu: 0.0.40
codegen_flags: <defaults>
</compile_context>

<pallas_src>
import jax
import jax.numpy as jnp
from jax import lax
from jax.experimental import pallas as pl
from jax.experimental.pallas import tpu as pltpu

LEAKY_SLOPE = 0.01  # torch.nn.LeakyReLU default negative_slope


def _leaky_relu(x):
    return jnp.where(x >= 0, x, LEAKY_SLOPE * x)


def _round_up(x, m):
    return ((x + m - 1) // m) * m


def critic_kernel(x_ref, w1_ref, b1_ref, w2_ref, b2_ref, w3t_ref, b3_ref, o_ref):
    # One batch tile: [TILE_B, 12] -> [2, TILE_B] (transposed, lane-dense).
    x = x_ref[...]

    h1 = jnp.dot(x, w1_ref[...], preferred_element_type=jnp.float32) + b1_ref[...]
    h1 = _leaky_relu(h1)

    h2 = jnp.dot(h1, w2_ref[...], preferred_element_type=jnp.float32) + b2_ref[...]
    h2 = _leaky_relu(h2)

    # Final layer computed directly transposed: out_t = W3 @ h2^T + b3
    #   w3t: [2, 32], h2: [TILE_B, 32]  ->  [2, TILE_B]  (A @ B^T pattern)
    out_t = lax.dot_general(
        w3t_ref[...], h2,
        dimension_numbers=(((1,), (1,)), ((), ())),
        preferred_element_type=jnp.float32,
    ) + b3_ref[...]

    o_ref[...] = out_t.astype(o_ref.dtype)


def critic_forward(state, params, tile_b=None):
    """Forward pass; returns [batch, 2] exactly like the PyTorch module."""
    w1, b1, w2, b2, w3t, b3 = params
    batch, feat = state.shape

    # Tile size: multiple of 8 (sublanes); when it does not cover the whole
    # padded batch it should be a multiple of 128 so the lane-dense (2, TILE_B)
    # output block is legal.
    if tile_b is None:
        tile_b = 1024 if batch > 1024 else _round_up(batch, 8)
    tile_b = max(8, _round_up(tile_b, 8))

    b_pad = _round_up(batch, tile_b)
    if b_pad != batch:
        state = jnp.pad(state, ((0, b_pad - batch), (0, 0)))
    grid = (b_pad // tile_b,)

    flops = 2 * b_pad * (12 * 64 + 64 * 32 + 32 * 2)
    bytes_accessed = 4 * (b_pad * feat + 2 * b_pad
                          + 12 * 64 + 64 + 64 * 32 + 32 + 2 * 32 + 2)

    out_t = pl.pallas_call(
        critic_kernel,
        out_shape=jax.ShapeDtypeStruct((2, b_pad), jnp.float32),
        grid=grid,
        in_specs=[
            pl.BlockSpec((tile_b, feat), lambda i: (i, 0)),  # pipelined state tile
            pl.BlockSpec(w1.shape, lambda i: (0, 0)),        # VMEM-resident params
            pl.BlockSpec(b1.shape, lambda i: (0, 0)),
            pl.BlockSpec(w2.shape, lambda i: (0, 0)),
            pl.BlockSpec(b2.shape, lambda i: (0, 0)),
            pl.BlockSpec(w3t.shape, lambda i: (0, 0)),
            pl.BlockSpec(b3.shape, lambda i: (0, 0)),
        ],
        out_specs=pl.BlockSpec((2, tile_b), lambda i: (0, i)),  # lane-dense output
        compiler_params=pltpu.CompilerParams(
            dimension_semantics=("parallel",)),
        cost_estimate=pl.CostEstimate(
            flops=flops, transcendentals=0, bytes_accessed=bytes_accessed),
    )(state, w1, b1, w2, b2, w3t, b3)

    # Back to the PyTorch [batch, 2] convention (tiny transpose in the wrapper).
    return out_t[:, :batch].T


def init_params(key):
    """Shapes matching Critic.__init__ (PyTorch Linear weight is [out, in]).

    w1/w2 are stored pre-transposed as [in, out] so layers 1-2 are x @ W + b;
    w3 is kept in the native [out, in] = [2, 32] layout because the kernel
    computes the last layer in transposed (lane-dense) orientation.
    Biases are 2-D for clean TPU layout/broadcast.
    """
    ks = jax.random.split(key, 6)

    def uniform(k, shape, fan_in):
        bound = 1.0 / jnp.sqrt(jnp.float32(fan_in))
        return jax.random.uniform(k, shape, jnp.float32, -bound, bound)

    w1 = uniform(ks[0], (12, 64), 12)
    b1 = uniform(ks[1], (1, 64), 12)
    w2 = uniform(ks[2], (64, 32), 64)
    b2 = uniform(ks[3], (1, 32), 64)
    w3t = uniform(ks[4], (2, 32), 32)   # [out, in]
    b3 = uniform(ks[5], (2, 1), 32)     # column vector (broadcast over lanes)
    return (w1, b1, w2, b2, w3t, b3)


def reference_forward(state, params):
    w1, b1, w2, b2, w3t, b3 = params
    h1 = _leaky_relu(state @ w1 + b1)
    h2 = _leaky_relu(h1 @ w2 + b2)
    return h2 @ w3t.T + b3.T


if __name__ == "__main__":
    key = jax.random.PRNGKey(0)
    k_param, k_state, k_state2 = jax.random.split(key, 3)

    params = init_params(k_param)

    # Small batch (single tile; every block equals the full array).
    state = jax.random.normal(k_state, (8, 12), jnp.float32)
    out = jax.block_until_ready(critic_forward(state, params))
    ref = reference_forward(state, params)
    assert out.shape == (8, 2)
    assert jnp.allclose(out, ref, atol=1e-5, rtol=1e-5)

    # Ragged batch exercising the multi-tile pipelined path:
    # 300 rows padded to 384, grid=(3,), lane-dense (2,128) output blocks,
    # weights resident across grid steps.
    state2 = jax.random.normal(k_state2, (300, 12), jnp.float32)
    out2 = jax.block_until_ready(critic_forward(state2, params, tile_b=128))
    ref2 = reference_forward(state2, params)
    assert out2.shape == (300, 2)
    assert jnp.allclose(out2, ref2, atol=1e-5, rtol=1e-5)

    print("KERNEL_OK")
</pallas_src>

<mosaic_0001>
module attributes {stable_mosaic.version = 11 : i64} {
  func.func @critic_kernel(%arg0: i32, %arg1: memref<8x12xf32, #tpu.memory_space<vmem>>, %arg2: memref<12x64xf32, #tpu.memory_space<vmem>>, %arg3: memref<1x64xf32, #tpu.memory_space<vmem>>, %arg4: memref<64x32xf32, #tpu.memory_space<vmem>>, %arg5: memref<1x32xf32, #tpu.memory_space<vmem>>, %arg6: memref<2x32xf32, #tpu.memory_space<vmem>>, %arg7: memref<2x1xf32, #tpu.memory_space<vmem>>, %arg8: memref<2x8xf32, #tpu.memory_space<vmem>>) attributes {dimension_semantics = [#tpu.dimension_semantics<parallel>], iteration_bounds = array<i64: 1>, scalar_prefetch = 0 : i64, scratch_operands = 0 : i64, tpu.core_type = #tpu.core_type<tc>, window_params = [{transform_indices = @transform_0, window_bounds = array<i64: 8, 12>}, {pipeline_mode = #tpu.pipeline_mode<synchronous>, transform_indices = @transform_1, window_bounds = array<i64: 12, 64>}, {pipeline_mode = #tpu.pipeline_mode<synchronous>, transform_indices = @transform_2, window_bounds = array<i64: 1, 64>}, {pipeline_mode = #tpu.pipeline_mode<synchronous>, transform_indices = @transform_3, window_bounds = array<i64: 64, 32>}, {pipeline_mode = #tpu.pipeline_mode<synchronous>, transform_indices = @transform_4, window_bounds = array<i64: 1, 32>}, {pipeline_mode = #tpu.pipeline_mode<synchronous>, transform_indices = @transform_5, window_bounds = array<i64: 2, 32>}, {pipeline_mode = #tpu.pipeline_mode<synchronous>, transform_indices = @transform_6, window_bounds = array<i64: 2, 1>}, {transform_indices = @transform_7, window_bounds = array<i64: 2, 8>}]} {
    %c0 = arith.constant 0 : index
    %c0_0 = arith.constant 0 : index
    %0 = vector.load %arg1[%c0, %c0_0] : memref<8x12xf32, #tpu.memory_space<vmem>>, vector<8x12xf32>
    %c0_1 = arith.constant 0 : index
    %c0_2 = arith.constant 0 : index
    %1 = vector.load %arg2[%c0_1, %c0_2] : memref<12x64xf32, #tpu.memory_space<vmem>>, vector<12x64xf32>
    %cst = arith.constant dense<0.000000e+00> : vector<8x64xf32>
    %2 = tpu.matmul %0, %1, %cst {dimension_numbers = #tpu.dot_dimension_numbers<[1], [0], [0], [1], [0, 0, 1, 1], [], []>} : vector<8x12xf32>, vector<12x64xf32>, vector<8x64xf32> -> vector<8x64xf32>
    %c0_3 = arith.constant 0 : index
    %c0_4 = arith.constant 0 : index
    %3 = vector.load %arg3[%c0_3, %c0_4] : memref<1x64xf32, #tpu.memory_space<vmem>>, vector<1x64xf32>
    %4 = vector.broadcast %3 : vector<1x64xf32> to vector<8x64xf32>
    %5 = arith.addf %2, %4 : vector<8x64xf32>
    %cst_5 = arith.constant 0.000000e+00 : f32
    %6 = vector.broadcast %cst_5 : f32 to vector<8x64xf32>
    %7 = arith.cmpf oge, %5, %6 : vector<8x64xf32>
    %cst_6 = arith.constant 0.00999999977 : f32
    %8 = vector.broadcast %cst_6 : f32 to vector<8x64xf32>
    %9 = arith.mulf %8, %5 : vector<8x64xf32>
    %10 = arith.select %7, %5, %9 : vector<8x64xi1>, vector<8x64xf32>
    %c0_7 = arith.constant 0 : index
    %c0_8 = arith.constant 0 : index
    %11 = vector.load %arg4[%c0_7, %c0_8] : memref<64x32xf32, #tpu.memory_space<vmem>>, vector<64x32xf32>
    %cst_9 = arith.constant dense<0.000000e+00> : vector<8x32xf32>
    %12 = tpu.matmul %10, %11, %cst_9 {dimension_numbers = #tpu.dot_dimension_numbers<[1], [0], [0], [1], [0, 0, 1, 1], [], []>} : vector<8x64xf32>, vector<64x32xf32>, vector<8x32xf32> -> vector<8x32xf32>
    %c0_10 = arith.constant 0 : index
    %c0_11 = arith.constant 0 : index
    %13 = vector.load %arg5[%c0_10, %c0_11] : memref<1x32xf32, #tpu.memory_space<vmem>>, vector<1x32xf32>
    %14 = vector.broadcast %13 : vector<1x32xf32> to vector<8x32xf32>
    %15 = arith.addf %12, %14 : vector<8x32xf32>
    %cst_12 = arith.constant 0.000000e+00 : f32
    %16 = vector.broadcast %cst_12 : f32 to vector<8x32xf32>
    %17 = arith.cmpf oge, %15, %16 : vector<8x32xf32>
    %cst_13 = arith.constant 0.00999999977 : f32
    %18 = vector.broadcast %cst_13 : f32 to vector<8x32xf32>
    %19 = arith.mulf %18, %15 : vector<8x32xf32>
    %20 = arith.select %17, %15, %19 : vector<8x32xi1>, vector<8x32xf32>
    %c0_14 = arith.constant 0 : index
    %c0_15 = arith.constant 0 : index
    %21 = vector.load %arg6[%c0_14, %c0_15] : memref<2x32xf32, #tpu.memory_space<vmem>>, vector<2x32xf32>
    %cst_16 = arith.constant dense<0.000000e+00> : vector<2x8xf32>
    %22 = tpu.matmul %21, %20, %cst_16 {dimension_numbers = #tpu.dot_dimension_numbers<[1], [1], [0], [0], [0, 0, 1, 0], [], []>} : vector<2x32xf32>, vector<8x32xf32>, vector<2x8xf32> -> vector<2x8xf32>
    %c0_17 = arith.constant 0 : index
    %c0_18 = arith.constant 0 : index
    %23 = vector.load %arg7[%c0_17, %c0_18] : memref<2x1xf32, #tpu.memory_space<vmem>>, vector<2x1xf32>
    %24 = vector.broadcast %23 : vector<2x1xf32> to vector<2x8xf32>
    %25 = arith.addf %22, %24 : vector<2x8xf32>
    %c0_19 = arith.constant 0 : index
    %c0_20 = arith.constant 0 : index
    %26 = vector.load %arg8[%c0_19, %c0_20] : memref<2x8xf32, #tpu.memory_space<vmem>>, vector<2x8xf32>
    tpu.vector_store %arg8[%c0_19, %c0_20], %25 {strides = array<i32>} : memref<2x8xf32, #tpu.memory_space<vmem>>, vector<2x8xf32>,
    return
  }
  func.func @transform_0(%arg0: i32) -> (i32, i32) {
    %c0_i32 = arith.constant 0 : i32
    %c0_i32_0 = arith.constant 0 : i32
    return %arg0, %c0_i32 : i32, i32
  }
  func.func @transform_1(%arg0: i32) -> (i32, i32) {
    %c0_i32 = arith.constant 0 : i32
    %c0_i32_0 = arith.constant 0 : i32
    %c0_i32_1 = arith.constant 0 : i32
    return %c0_i32, %c0_i32_0 : i32, i32
  }
  func.func @transform_2(%arg0: i32) -> (i32, i32) {
    %c0_i32 = arith.constant 0 : i32
    %c0_i32_0 = arith.constant 0 : i32
    %c0_i32_1 = arith.constant 0 : i32
    return %c0_i32, %c0_i32_0 : i32, i32
  }
  func.func @transform_3(%arg0: i32) -> (i32, i32) {
    %c0_i32 = arith.constant 0 : i32
    %c0_i32_0 = arith.constant 0 : i32
    %c0_i32_1 = arith.constant 0 : i32
    return %c0_i32, %c0_i32_0 : i32, i32
  }
  func.func @transform_4(%arg0: i32) -> (i32, i32) {
    %c0_i32 = arith.constant 0 : i32
    %c0_i32_0 = arith.constant 0 : i32
    %c0_i32_1 = arith.constant 0 : i32
    return %c0_i32, %c0_i32_0 : i32, i32
  }
  func.func @transform_5(%arg0: i32) -> (i32, i32) {
    %c0_i32 = arith.constant 0 : i32
    %c0_i32_0 = arith.constant 0 : i32
    %c0_i32_1 = arith.constant 0 : i32
    return %c0_i32, %c0_i32_0 : i32, i32
  }
  func.func @transform_6(%arg0: i32) -> (i32, i32) {
    %c0_i32 = arith.constant 0 : i32
    %c0_i32_0 = arith.constant 0 : i32
    %c0_i32_1 = arith.constant 0 : i32
    return %c0_i32, %c0_i32_0 : i32, i32
  }
  func.func @transform_7(%arg0: i32) -> (i32, i32) {
    %c0_i32 = arith.constant 0 : i32
    %c0_i32_0 = arith.constant 0 : i32
    return %c0_i32, %arg0 : i32, i32
  }
}

</mosaic_0001>

<llo_original>
// kernel: tpu_custom_call.1
$region0: #{tpu_custom_call.1}
  #allocation0 [shape = 'u32[]', space=smem, size = 0x4, offset = 0x4, fixed_abs, tag = 'smem constant byte address 0x4 - core index']
  #allocation1 [shape = 'u32[72,128]{1,0:T(1,128)}', space=vmem, size = 0x9000, scoped, tag = 'internal scratch']
  %s0 = inlined_call_operand.vmem [shape: f32[8,12], index: 0, kind: input, shape index: {}]
  %s1 = inlined_call_operand.vmem [shape: f32[12,64], index: 1, kind: input, shape index: {}]
  %s2 = inlined_call_operand.vmem [shape: f32[1,64], index: 2, kind: input, shape index: {}]
  %s3 = inlined_call_operand.vmem [shape: f32[64,32], index: 3, kind: input, shape index: {}]
  %s4 = inlined_call_operand.vmem [shape: f32[1,32], index: 4, kind: input, shape index: {}]
  %s5 = inlined_call_operand.vmem [shape: f32[2,32], index: 5, kind: input, shape index: {}]
  %s6 = inlined_call_operand.vmem [shape: f32[2,1], index: 6, kind: input, shape index: {}]
  %s7 = inlined_call_operand.hbm [shape: f32[2,8], index: 7, kind: output, shape index: {}]
  %s8 = sld [smem:[#allocation0]]
  $region38: #{tpu_custom_call.1} parent=0
    _
  %s10 = ssub.s32 1, %s8
  %s11 = scalar_select 0, %s10, %s8
  $region1: #{tpu_custom_call.1} parent=0
    #allocation2 [shape = 'u8[1024]{0}', space=vmem, size = 0x400, scoped, tag = 'output window, operand 0, single buffered']
    #allocation3 [shape = 's32[1]{0}', space=sflag, size = 0x4, scoped, tag = 'scoped memory for tpu_custom_call.1']
    %12 = vsyncpa [#allocation3], 0
    // Predicated region
    $region2: #{tpu_custom_call.1} parent=1 // pred_check
      _
    $region3: #{tpu_custom_call.1} parent=1 // pred_check_branch
      %14 = sbr.rel (0) target = $region5
    $region4: #{tpu_custom_call.1} parent=1 // pred_region
      _
    $region5: #{tpu_custom_call.1} parent=1 // pred_fallthru
      _
    // Predicated region
    $region6: #{tpu_custom_call.1} parent=1 // pred_check
      _
    $region7: #{tpu_custom_call.1} parent=1 // pred_check_branch
      %16 = sbr.rel (0) target = $region9
    $region8: #{tpu_custom_call.1} parent=1 // pred_region
      _
    $region9: #{tpu_custom_call.1} parent=1 // pred_fallthru
      _
    // Predicated region
    $region10: #{tpu_custom_call.1} parent=1 // pred_check
      _
    $region11: #{tpu_custom_call.1} parent=1 // pred_check_branch
      %18 = sbr.rel (0) target = $region13
    $region12: #{tpu_custom_call.1} parent=1 // pred_region
      _
    $region13: #{tpu_custom_call.1} parent=1 // pred_fallthru
      _
    // Predicated region
    $region14: #{tpu_custom_call.1} parent=1 // pred_check
      _
    $region15: #{tpu_custom_call.1} parent=1 // pred_check_branch
      %20 = sbr.rel (0) target = $region17
    $region16: #{tpu_custom_call.1} parent=1 // pred_region
      _
    $region17: #{tpu_custom_call.1} parent=1 // pred_fallthru
      _
    // Predicated region
    $region18: #{tpu_custom_call.1} parent=1 // pred_check
      _
    $region19: #{tpu_custom_call.1} parent=1 // pred_check_branch
      %22 = sbr.rel (0) target = $region21
    $region20: #{tpu_custom_call.1} parent=1 // pred_region
      _
    $region21: #{tpu_custom_call.1} parent=1 // pred_fallthru
      _
    // Predicated region
    $region22: #{tpu_custom_call.1} parent=1 // pred_check
      _
    $region23: #{tpu_custom_call.1} parent=1 // pred_check_branch
      %24 = sbr.rel (0) target = $region25
    $region24: #{tpu_custom_call.1} parent=1 // pred_region
      _
    $region25: #{tpu_custom_call.1} parent=1 // pred_fallthru
      _
    // Predicated region
    $region26: #{tpu_custom_call.1} parent=1 // pred_check
      _
    $region27: #{tpu_custom_call.1} parent=1 // pred_check_branch
      %26 = sbr.rel (0) target = $region29
    $region28: #{tpu_custom_call.1} parent=1 // pred_region
      _
    $region29: #{tpu_custom_call.1} parent=1 // pred_fallthru
      _
    %v27 = vld [vmem:[%s0] sm:$0xff]
    %v28 = vld [vmem:[%s1] sm:$0xff]
    %v29 = vld [vmem:[%s1 + $0x8] sm:$0xf]
    %v30 = vld [vmem:[%s2] sm:$0x1]
    %v32 = vperm.slane %v30, 0
    %vm34 = vcmask 97280
    %v36 = vsel %vm34, %v27, 0
    %vm38 = vcmask 1043456
    %v40 = vsel %vm38, %v29, 0
    %42 = vmatpush.msra.mxu0 0.0
    %43 = vmatpush.msra.mxu0 0.0
    %44 = vmatpush.msra.mxu0 0.0
    %45 = vmatpush.msra.mxu0 0.0
    %46 = vmatpush.msra.mxu0 0.0
    %47 = vmatpush.msra.mxu0 0.0
    %48 = vmatpush.msra.mxu0 0.0
    %49 = vmatpush.msra.mxu0 0.0
    %50 = vmatpush.msra.mxu0 0.0
    %51 = vmatpush.msra.mxu0 0.0
    %52 = vmatpush.msra.mxu0 0.0
    %53 = vmatpush.msra.mxu0 0.0
    %54 = vmatpush.msra.mxu0 0.0
    %55 = vmatpush.msra.mxu0 0.0
    %56 = vmatpush.msra.mxu0 %v40
    %57 = vmatpush.msra.mxu0 %v28
    %58 = vmatmul.f32.gmra.mxu0 %v36
    %v59 = vpop.f32.mrf.mxu0
    %v60 = vadd.f32 %v32, %v59
    %61 = vdwg.mxu0
    %vm62 = vcmp.ge.f32.partialorder %v60, 0.0
    %v63 = vmul.f32 %v60, 0.01
    %v64 = vsel %vm62, %v60, %v63
    %v65 = vld [vmem:[%s3] sm:$0xff]
    %v66 = vld [vmem:[%s3 + $0x8] sm:$0xff]
    %v67 = vld [vmem:[%s3 + $0x10] sm:$0xff]
    %v68 = vld [vmem:[%s3 + $0x18] sm:$0xff]
    %v69 = vld [vmem:[%s3 + $0x20] sm:$0xff]
    %v70 = vld [vmem:[%s3 + $0x28] sm:$0xff]
    %v71 = vld [vmem:[%s3 + $0x30] sm:$0xff]
    %v72 = vld [vmem:[%s3 + $0x38] sm:$0xff]
    %v73 = vld [vmem:[%s4] sm:$0x1]
    %v75 = vperm.slane %v73, 0
    %vm77 = vcmask 523264
    %v79 = vsel %vm77, %v64, 0
    %81 = vmatpush.msra.mxu0 0.0
    %82 = vmatpush.msra.mxu0 0.0
    %83 = vmatpush.msra.mxu0 0.0
    %84 = vmatpush.msra.mxu0 0.0
    %85 = vmatpush.msra.mxu0 0.0
    %86 = vmatpush.msra.mxu0 0.0
    %87 = vmatpush.msra.mxu0 0.0
    %88 = vmatpush.msra.mxu0 0.0
    %89 = vmatpush.msra.mxu0 %v72
    %90 = vmatpush.msra.mxu0 %v71
    %91 = vmatpush.msra.mxu0 %v70
    %92 = vmatpush.msra.mxu0 %v69
    %93 = vmatpush.msra.mxu0 %v68
    %94 = vmatpush.msra.mxu0 %v67
    %95 = vmatpush.msra.mxu0 %v66
    %96 = vmatpush.msra.mxu0 %v65
    %97 = vmatmul.f32.gmra.mxu0 %v79
    %v98 = vpop.f32.mrf.mxu0
    %v99 = vadd.f32 %v75, %v98
    %100 = vdwg.mxu0
    %vm101 = vcmp.ge.f32.partialorder %v99, 0.0
    %v102 = vmul.f32 %v99, 0.01
    %v103 = vsel %vm101, %v99, %v102
    %v104 = vld [vmem:[%s5] sm:$0x3]
    %v105 = vld [vmem:[%s6] sm:$0x3]
    %107 = vset.pattern.permute.xlu0 0
    %108 = vperm.xlu0 %107, %v105
    %v109 = vpop.permute.xlu0 %108
    %vm111 = vcmask 261120
    %v113 = vsel %vm111, %v104, 0
    %v116 = vsel %vm111, %v103, 0
    %118 = vmatpush.xpose.msra.mxu0 0.0
    %119 = vmatpush.xpose.msra.mxu0 0.0
    %120 = vmatpush.xpose.msra.mxu0 0.0
    %121 = vmatpush.xpose.msra.mxu0 0.0
    %122 = vmatpush.xpose.msra.mxu0 0.0
    %123 = vmatpush.xpose.msra.mxu0 0.0
    %124 = vmatpush.xpose.msra.mxu0 0.0
    %125 = vmatpush.xpose.msra.mxu0 0.0
    %126 = vmatpush.xpose.msra.mxu0 0.0
    %127 = vmatpush.xpose.msra.mxu0 0.0
    %128 = vmatpush.xpose.msra.mxu0 0.0
    %129 = vmatpush.xpose.msra.mxu0 0.0
    %130 = vmatpush.xpose.msra.mxu0 0.0
    %131 = vmatpush.xpose.msra.mxu0 0.0
    %132 = vmatpush.xpose.msra.mxu0 0.0
    %133 = vmatpush.xpose.msra.mxu0 %v116
    %134 = vmatmul.f32.gmra.mxu0 %v113
    %v135 = vpop.f32.mrf.mxu0
    %v136 = vadd.f32 %v109, %v135
    %137 = vdwg.mxu0
    %vm138 = vcmask 58368
    %139 = vst.msk [vmem:[#allocation2] sm:$0x3] %vm138, %v136
    // Predicated region
    $region30: #{tpu_custom_call.1} parent=1 // pred_check
      _
    $region31: #{tpu_custom_call.1} parent=1 // pred_check_branch
      %141 = sbr.rel (0) target = $region33
    $region32: #{tpu_custom_call.1} parent=1 // pred_region
      %143 = vsyncadd [#allocation3], 0
      %s145 = sshll.u32 [#allocation2], 4
      %s146 = int_to_ptr.vmem [resolvable:$true] %s145
      %s147 = sshll.u32 %s7, 4
      %s148 = int_to_ptr.hbm [resolvable:$true] %s147
      %150 = dma.vmem_to_hbm [thread:$0]  %s146, 32, %s148, [#allocation3]
    $region33: #{tpu_custom_call.1} parent=1 // pred_fallthru
      _
    // Predicated region
    $region34: #{tpu_custom_call.1} parent=1 // pred_check
      _
    $region35: #{tpu_custom_call.1} parent=1 // pred_check_branch
      %152 = sbr.rel (0) target = $region37
    $region36: #{tpu_custom_call.1} parent=1 // pred_region
      %154 = dma.done [#allocation3], 32
    $region37: #{tpu_custom_call.1} parent=1 // pred_fallthru
      _
    %155 = vsyncpa [#allocation3], 1

</llo_original>
